<compile_context>
chip_gen: v7x
topology: tpu7x:2x2x1
jax: 0.10.0
libtpu: 0.0.40
codegen_flags: <defaults>
</compile_context>

<pallas_src>
import functools
import math

import jax
import jax.numpy as jnp
from jax import lax
from jax.experimental import pallas as pl
from jax.experimental.pallas import tpu as pltpu

_INV_SQRT2 = 0.7071067811865476
_SQRT_2_OVER_PI = 0.7978845608028654


def _round_up(x, m):
    return (x + m - 1) // m * m


def _otk_kernel(x_ref, w_ref, b_ref, o_ref, acc_ref, *, approximate_gelu,
                compute_dtype):
    # x_ref  : (TM, TK)  activation tile (resident across the inner N sweep)
    # w_ref  : (TK, TN)  pre-transposed weight tile (streamed)
    # b_ref  : (1, TN)   bias tile
    # o_ref  : (TM, TN)  output tile
    # acc_ref: (TM, TN)  f32 accumulator scratch (lives across the K axis)
    k = pl.program_id(2)

    @pl.when(k == 0)
    def _init():
        acc_ref[...] = jnp.zeros_like(acc_ref)

    x = x_ref[...]
    w = w_ref[...]
    if compute_dtype is not None:            # optional bf16 MXU feed
        x = x.astype(compute_dtype)
        w = w.astype(compute_dtype)
    acc_ref[...] += jnp.dot(x, w, preferred_element_type=jnp.float32)

    @pl.when(k == pl.num_programs(2) - 1)
    def _finalize():
        h = acc_ref[...] + b_ref[...].astype(jnp.float32)
        if approximate_gelu:
            # tanh GELU: transcendental runs on the (otherwise idle) EUP slot.
            inner = _SQRT_2_OVER_PI * (h + 0.044715 * (h * h * h))
            g = 0.5 * h * (1.0 + jnp.tanh(inner))
        else:
            # Exact erf GELU -- matches nn.GELU() default.
            g = 0.5 * h * (1.0 + lax.erf(h * _INV_SQRT2))
        o_ref[...] = g.astype(o_ref.dtype)


def _est_vmem_bytes(TM, TN, TK, in_itemsize, out_itemsize):
    # Double-buffered input/output blocks + f32 accumulator scratch.
    return (2 * TM * TK * in_itemsize        # x
            + 2 * TK * TN * in_itemsize      # w^T
            + 2 * TN * in_itemsize           # bias
            + 2 * TM * TN * out_itemsize     # out
            + TM * TN * 4)                   # accumulator


def otk_layer_forward(fea, mask, weight, bias, *, tm=512, tn=256, tk=2048,
                      approximate_gelu=False, compute_dtype=None):
    """fea: (B, S, in_dim); mask: ignored; weight: (hidden, in_dim); bias: (hidden,)."""
    del mask  # unused, as in the PyTorch module's forward
    B, S, in_dim = fea.shape
    hidden = weight.shape[0]
    M = B * S
    dtype = fea.dtype
    in_itemsize = jnp.dtype(dtype).itemsize
    out_itemsize = in_itemsize

    # ---- tile sizes -------------------------------------------------------
    TM = min(tm, _round_up(M, 8))            # multiple of 8; ragged edge OK
    if in_dim <= tk:
        TK, Kp, k_tiles = in_dim, in_dim, 1  # K unblocked: no K padding needed
    else:
        TK = tk                              # multiple of 128
        Kp = _round_up(in_dim, TK)
        k_tiles = Kp // TK

    Np = _round_up(hidden, 128)              # lane-dense output columns
    vmem_budget = 24 * 1024 * 1024
    if (k_tiles == 1
            and _est_vmem_bytes(TM, Np, TK, in_itemsize, out_itemsize) <= vmem_budget):
        # Whole weight panel as one N block: constant block index -> the
        # weight (like x) is read from HBM exactly once.
        TN = Np
    else:
        # Largest multiple of 128 dividing Np (capped at tn) -> no extra
        # hidden padding beyond the 128 alignment (e.g. hidden=384 -> TN=128).
        TN = 128
        cand = (min(tn, Np) // 128) * 128
        while cand >= 128:
            if Np % cand == 0:
                TN = cand
                break
            cand -= 128

    m_tiles = pl.cdiv(M, TM)
    n_tiles = Np // TN

    # ---- operand prep (weight pre-transposed once; x padded only for K) ----
    x2d = fea.reshape(M, in_dim)
    if Kp != in_dim:
        x2d = jnp.pad(x2d, ((0, 0), (0, Kp - in_dim)))   # zeros: safe for dot
    wT = weight.T                                        # (in_dim, hidden)
    if (Kp, Np) != (in_dim, hidden):
        wT = jnp.pad(wT, ((0, Kp - in_dim), (0, Np - hidden)))
    b2d = bias.reshape(1, hidden)
    if Np != hidden:
        b2d = jnp.pad(b2d, ((0, 0), (0, Np - hidden)))

    # ---- advisory cost estimate (reflects actual streaming traffic) --------
    Mp_eff = m_tiles * TM
    x_passes = 1 if k_tiles == 1 else n_tiles
    w_passes = 1 if (n_tiles == 1 and k_tiles == 1) else m_tiles
    cost = pl.CostEstimate(
        flops=2 * Mp_eff * Kp * Np,
        transcendentals=Mp_eff * Np,
        bytes_accessed=int((x_passes * Mp_eff * Kp
                            + w_passes * Kp * Np
                            + m_tiles * Np
                            + Mp_eff * Np) * in_itemsize),
    )

    est = _est_vmem_bytes(TM, TN, TK, in_itemsize, out_itemsize)
    vmem_limit = int(min(48 * 1024 * 1024, max(2 * est, 16 * 1024 * 1024)))

    kernel = functools.partial(_otk_kernel,
                               approximate_gelu=approximate_gelu,
                               compute_dtype=compute_dtype)

    out2d = pl.pallas_call(
        kernel,
        out_shape=jax.ShapeDtypeStruct((M, Np), dtype),
        grid_spec=pltpu.PrefetchScalarGridSpec(
            num_scalar_prefetch=0,
            # M outermost (activation tile resident across the inner N sweep),
            # K innermost (reduction into the f32 accumulator scratch).
            grid=(m_tiles, n_tiles, k_tiles),
            in_specs=[
                pl.BlockSpec((TM, TK), lambda m, n, k: (m, k)),  # x (resident)
                pl.BlockSpec((TK, TN), lambda m, n, k: (k, n)),  # w^T (streamed)
                pl.BlockSpec((1, TN), lambda m, n, k: (0, n)),   # bias
            ],
            out_specs=pl.BlockSpec((TM, TN), lambda m, n, k: (m, n)),
            scratch_shapes=[pltpu.VMEM((TM, TN), jnp.float32)],
        ),
        compiler_params=pltpu.CompilerParams(
            dimension_semantics=("parallel", "parallel", "arbitrary"),
            vmem_limit_bytes=vmem_limit,
        ),
        cost_estimate=cost,
    )(x2d, wT, b2d)

    if Np != hidden:
        out2d = out2d[:, :hidden]
    return out2d.reshape(B, S, hidden)


def _ref(fea, weight, bias):
    return jax.nn.gelu(fea @ weight.T + bias, approximate=False)


if __name__ == "__main__":
    key = jax.random.PRNGKey(0)

    # ---- test 1: small shapes matching the module's forward signature ----
    B, S, in_dim, hidden_dim = 2, 8, 32, 32
    k_fea, k_w, k_b, key = jax.random.split(key, 4)
    fea = jax.random.normal(k_fea, (B, S, in_dim), dtype=jnp.float32)
    mask = jnp.ones((B, S), dtype=jnp.float32)  # ignored by forward
    bound = 1.0 / math.sqrt(in_dim)
    weight = jax.random.uniform(k_w, (hidden_dim, in_dim),
                                minval=-bound, maxval=bound, dtype=jnp.float32)
    bias = jax.random.uniform(k_b, (hidden_dim,),
                              minval=-bound, maxval=bound, dtype=jnp.float32)

    out = otk_layer_forward(fea, mask, weight, bias)
    out = jax.block_until_ready(out)
    ref = _ref(fea, weight, bias)
    assert out.shape == (B, S, hidden_dim)
    assert jnp.allclose(out, ref, atol=1e-5, rtol=1e-5)

    # ---- test 2: larger, non-aligned shapes (partial M blocks, K=200) ----
    B2, S2, in2, hid2 = 4, 300, 200, 384
    k_fea, k_w, k_b, key = jax.random.split(key, 4)
    fea2 = jax.random.normal(k_fea, (B2, S2, in2), dtype=jnp.float32)
    mask2 = jnp.ones((B2, S2), dtype=jnp.float32)
    bound2 = 1.0 / math.sqrt(in2)
    weight2 = jax.random.uniform(k_w, (hid2, in2),
                                 minval=-bound2, maxval=bound2, dtype=jnp.float32)
    bias2 = jax.random.uniform(k_b, (hid2,),
                               minval=-bound2, maxval=bound2, dtype=jnp.float32)

    out2 = otk_layer_forward(fea2, mask2, weight2, bias2)
    out2 = jax.block_until_ready(out2)
    ref2 = _ref(fea2, weight2, bias2)
    assert out2.shape == (B2, S2, hid2)
    assert jnp.allclose(out2, ref2, atol=1e-3, rtol=1e-3)

    # ---- test 3: force the K-blocked accumulator path (tk < in_dim) ----
    out3 = otk_layer_forward(fea2, mask2, weight2, bias2, tk=128)
    out3 = jax.block_until_ready(out3)
    assert jnp.allclose(out3, ref2, atol=1e-3, rtol=1e-3)

    print("KERNEL_OK")
</pallas_src>

<mosaic_0001>
module attributes {stable_mosaic.version = 11 : i64} {
  func.func @_otk_kernel(%arg0: i32, %arg1: i32, %arg2: i32, %arg3: memref<16x32xf32, #tpu.memory_space<vmem>>, %arg4: memref<32x128xf32, #tpu.memory_space<vmem>>, %arg5: memref<1x128xf32, #tpu.memory_space<vmem>>, %arg6: memref<16x128xf32, #tpu.memory_space<vmem>>, %arg7: memref<16x128xf32, #tpu.memory_space<vmem>>) attributes {dimension_semantics = [#tpu.dimension_semantics<parallel>, #tpu.dimension_semantics<parallel>, #tpu.dimension_semantics<arbitrary>], iteration_bounds = array<i64: 1, 1, 1>, scalar_prefetch = 0 : i64, scratch_operands = 1 : i64, tpu.core_type = #tpu.core_type<tc>, window_params = [{transform_indices = @transform_0, window_bounds = array<i64: 16, 32>}, {transform_indices = @transform_1, window_bounds = array<i64: 32, 128>}, {transform_indices = @transform_2, window_bounds = array<i64: 1, 128>}, {transform_indices = @transform_3, window_bounds = array<i64: 16, 128>}]} {
    %c0_i32 = arith.constant 0 : i32
    %0 = arith.cmpi eq, %arg2, %c0_i32 : i32
    %1 = arith.extui %0 : i1 to i32
    %c0_i32_0 = arith.constant 0 : i32
    %2 = arith.cmpi ne, %1, %c0_i32_0 : i32
    scf.if %2 {
      %cst_10 = arith.constant 0.000000e+00 : f32
      %12 = vector.broadcast %cst_10 : f32 to vector<16x128xf32>
      %c0_11 = arith.constant 0 : index
      %c0_12 = arith.constant 0 : index
      %13 = vector.load %arg7[%c0_11, %c0_12] : memref<16x128xf32, #tpu.memory_space<vmem>>, vector<16x128xf32>
      tpu.vector_store %arg7[%c0_11, %c0_12], %12 {strides = array<i32>} : memref<16x128xf32, #tpu.memory_space<vmem>>, vector<16x128xf32>,
    } else {
    }
    %c0 = arith.constant 0 : index
    %c0_1 = arith.constant 0 : index
    %3 = vector.load %arg3[%c0, %c0_1] : memref<16x32xf32, #tpu.memory_space<vmem>>, vector<16x32xf32>
    %c0_2 = arith.constant 0 : index
    %c0_3 = arith.constant 0 : index
    %4 = vector.load %arg4[%c0_2, %c0_3] : memref<32x128xf32, #tpu.memory_space<vmem>>, vector<32x128xf32>
    %c0_4 = arith.constant 0 : index
    %c0_5 = arith.constant 0 : index
    %5 = vector.load %arg7[%c0_4, %c0_5] : memref<16x128xf32, #tpu.memory_space<vmem>>, vector<16x128xf32>
    %cst = arith.constant dense<0.000000e+00> : vector<16x128xf32>
    %6 = tpu.matmul %3, %4, %cst {dimension_numbers = #tpu.dot_dimension_numbers<[1], [0], [0], [1], [0, 0, 1, 1], [], []>} : vector<16x32xf32>, vector<32x128xf32>, vector<16x128xf32> -> vector<16x128xf32>
    %7 = arith.addf %5, %6 : vector<16x128xf32>
    %c0_6 = arith.constant 0 : index
    %c0_7 = arith.constant 0 : index
    %8 = vector.load %arg7[%c0_6, %c0_7] : memref<16x128xf32, #tpu.memory_space<vmem>>, vector<16x128xf32>
    tpu.vector_store %arg7[%c0_6, %c0_7], %7 {strides = array<i32>} : memref<16x128xf32, #tpu.memory_space<vmem>>, vector<16x128xf32>,
    %c0_i32_8 = arith.constant 0 : i32
    %9 = arith.cmpi eq, %arg2, %c0_i32_8 : i32
    %10 = arith.extui %9 : i1 to i32
    %c0_i32_9 = arith.constant 0 : i32
    %11 = arith.cmpi ne, %10, %c0_i32_9 : i32
    scf.if %11 {
      %c0_10 = arith.constant 0 : index
      %c0_11 = arith.constant 0 : index
      %12 = vector.load %arg7[%c0_10, %c0_11] : memref<16x128xf32, #tpu.memory_space<vmem>>, vector<16x128xf32>
      %c0_12 = arith.constant 0 : index
      %c0_13 = arith.constant 0 : index
      %13 = vector.load %arg5[%c0_12, %c0_13] : memref<1x128xf32, #tpu.memory_space<vmem>>, vector<1x128xf32>
      %14 = vector.broadcast %13 : vector<1x128xf32> to vector<16x128xf32>
      %15 = arith.addf %12, %14 : vector<16x128xf32>
      %cst_14 = arith.constant 5.000000e-01 : f32
      %16 = vector.broadcast %cst_14 : f32 to vector<16x128xf32>
      %17 = arith.mulf %16, %15 : vector<16x128xf32>
      %cst_15 = arith.constant 0.707106769 : f32
      %18 = vector.broadcast %cst_15 : f32 to vector<16x128xf32>
      %19 = arith.mulf %15, %18 : vector<16x128xf32>
      %20 = math.erf %19 : vector<16x128xf32>
      %cst_16 = arith.constant 1.000000e+00 : f32
      %21 = vector.broadcast %cst_16 : f32 to vector<16x128xf32>
      %22 = arith.addf %21, %20 : vector<16x128xf32>
      %23 = arith.mulf %17, %22 : vector<16x128xf32>
      %c0_17 = arith.constant 0 : index
      %c0_18 = arith.constant 0 : index
      %24 = vector.load %arg6[%c0_17, %c0_18] : memref<16x128xf32, #tpu.memory_space<vmem>>, vector<16x128xf32>
      tpu.vector_store %arg6[%c0_17, %c0_18], %23 {strides = array<i32>} : memref<16x128xf32, #tpu.memory_space<vmem>>, vector<16x128xf32>,
    } else {
    }
    return
  }
  func.func @transform_0(%arg0: i32, %arg1: i32, %arg2: i32) -> (i32, i32) {
    %c0_i32 = arith.constant 0 : i32
    return %arg0, %arg2 : i32, i32
  }
  func.func @transform_1(%arg0: i32, %arg1: i32, %arg2: i32) -> (i32, i32) {
    %c0_i32 = arith.constant 0 : i32
    return %arg2, %arg1 : i32, i32
  }
  func.func @transform_2(%arg0: i32, %arg1: i32, %arg2: i32) -> (i32, i32) {
    %c0_i32 = arith.constant 0 : i32
    %c0_i32_0 = arith.constant 0 : i32
    return %c0_i32, %arg1 : i32, i32
  }
  func.func @transform_3(%arg0: i32, %arg1: i32, %arg2: i32) -> (i32, i32) {
    %c0_i32 = arith.constant 0 : i32
    return %arg0, %arg1 : i32, i32
  }
}

</mosaic_0001>

<llo_original>
// kernel: tpu_custom_call.1
$region0: #{tpu_custom_call.1}
  #allocation0 [shape = 'u32[]', space=smem, size = 0x4, offset = 0x4, fixed_abs, tag = 'smem constant byte address 0x4 - core index']
  #allocation1 [shape = 'u32[144,128]{1,0:T(1,128)}', space=vmem, size = 0x12000, scoped, tag = 'internal scratch']
  #allocation2 [shape = 'f32[16,128]{1,0:T(8,128)}', space=vmem, size = 0x2000, scoped, tag = 'scratch operand']
  %s0 = inlined_call_operand.hbm [shape: f32[16,32], index: 0, kind: input, shape index: {}]
  %s1 = inlined_call_operand.hbm [shape: f32[32,128], index: 1, kind: input, shape index: {}]
  %s2 = inlined_call_operand.vmem [shape: f32[1,128], index: 2, kind: input, shape index: {}]
  %s3 = inlined_call_operand.hbm [shape: f32[16,128], index: 3, kind: output, shape index: {}]
  %s4 = sld [smem:[#allocation0]]
  $region38: #{tpu_custom_call.1} parent=0
    _
  %s6 = ssub.s32 1, %s4
  %s7 = scalar_select 0, %s6, %s4
  $region1: #{tpu_custom_call.1} parent=0
    #allocation3 [shape = 'u8[8192]{0}', space=vmem, size = 0x2000, scoped, tag = 'input window, operand 0, single buffered']
    #allocation4 [shape = 's32[1]{0}', space=sflag, size = 0x4, scoped, tag = 'scoped memory for tpu_custom_call.1']
    #allocation5 [shape = 's32[1]{0}', space=sflag, size = 0x4, scoped, tag = 'scoped memory for tpu_custom_call.1']
    #allocation6 [shape = 'u8[16384]{0}', space=vmem, size = 0x4000, scoped, tag = 'input window, operand 1, single buffered']
    #allocation7 [shape = 's32[1]{0}', space=sflag, size = 0x4, scoped, tag = 'scoped memory for tpu_custom_call.1']
    #allocation8 [shape = 'u8[8192]{0}', space=vmem, size = 0x2000, scoped, tag = 'output window, operand 0, single buffered']
    %8 = vsyncpa [#allocation4], 0
    %9 = vsyncpa [#allocation7], 0
    %10 = vsyncpa [#allocation5], 0
    // Predicated region
    $region2: #{tpu_custom_call.1} parent=1 // pred_check
      _
    $region3: #{tpu_custom_call.1} parent=1 // pred_check_branch
      %12 = sbr.rel (0) target = $region5
    $region4: #{tpu_custom_call.1} parent=1 // pred_region
      %s14 = ssub.s32 256, 256
      %15 = vsyncadd [#allocation4], %s14
      %s16 = sshll.u32 [#allocation3], 4
      %s17 = int_to_ptr.vmem [resolvable:$true] %s16
      %22 = dma.hbm_to_vmem [thread:$0]  %s0, 256, %s17, [#allocation4], 128, 128, 8
    $region5: #{tpu_custom_call.1} parent=1 // pred_fallthru
      _
    // Predicated region
    $region6: #{tpu_custom_call.1} parent=1 // pred_check
      _
    $region7: #{tpu_custom_call.1} parent=1 // pred_check_branch
      %24 = sbr.rel (0) target = $region9
    $region8: #{tpu_custom_call.1} parent=1 // pred_region
      %s26 = ssub.s32 512, 512
      %27 = vsyncadd [#allocation7], %s26
      %s28 = sshll.u32 [#allocation6], 4
      %s29 = int_to_ptr.vmem [resolvable:$true] %s28
      %34 = dma.hbm_to_vmem [thread:$0]  %s1, 512, %s29, [#allocation7], 128, 128, 8
    $region9: #{tpu_custom_call.1} parent=1 // pred_fallthru
      _
    // Predicated region
    $region10: #{tpu_custom_call.1} parent=1 // pred_check
      _
    $region11: #{tpu_custom_call.1} parent=1 // pred_check_branch
      %36 = sbr.rel (0) target = $region13
    $region12: #{tpu_custom_call.1} parent=1 // pred_region
      _
    $region13: #{tpu_custom_call.1} parent=1 // pred_fallthru
      _
    // Predicated region
    $region14: #{tpu_custom_call.1} parent=1 // pred_check
      _
    $region15: #{tpu_custom_call.1} parent=1 // pred_check_branch
      %38 = sbr.rel (0) target = $region17
    $region16: #{tpu_custom_call.1} parent=1 // pred_region
      %39 = dma.done [#allocation4], 256
    $region17: #{tpu_custom_call.1} parent=1 // pred_fallthru
      _
    // Predicated region
    $region18: #{tpu_custom_call.1} parent=1 // pred_check
      _
    $region19: #{tpu_custom_call.1} parent=1 // pred_check_branch
      %41 = sbr.rel (0) target = $region21
    $region20: #{tpu_custom_call.1} parent=1 // pred_region
      %42 = dma.done [#allocation7], 512
    $region21: #{tpu_custom_call.1} parent=1 // pred_fallthru
      _
    %p43 = scmp.eq.s32.totalorder 0, 0
    // Predicated region
    $region22: #{tpu_custom_call.1} parent=1 // pred_check
      %p44 = pneg %p43
    $region23: #{tpu_custom_call.1} parent=1 // pred_check_branch
      %46 = sbr.rel (%p44) target = $region25
    $region24: #{tpu_custom_call.1} parent=1 // pred_region
      %47 = vst [vmem:[#allocation2] sm:$0xff] 0.0
      %48 = vst [vmem:[#allocation2 + $0x8] sm:$0xff] 0.0
    $region25: #{tpu_custom_call.1} parent=1 // pred_fallthru
      _
    %v49 = vld [vmem:[#allocation3] sm:$0xff]
    %v50 = vld [vmem:[#allocation3 + $0x8] sm:$0xff]
    %v51 = vld [vmem:[#allocation6] sm:$0xff]
    %v52 = vld [vmem:[#allocation6 + $0x8] sm:$0xff]
    %v53 = vld [vmem:[#allocation6 + $0x10] sm:$0xff]
    %v54 = vld [vmem:[#allocation6 + $0x18] sm:$0xff]
    %v55 = vld [vmem:[#allocation2] sm:$0xff]
    %v56 = vld [vmem:[#allocation2 + $0x8] sm:$0xff]
    %vm57 = vcmask 261120
    %v59 = vsel %vm57, %v49, 0
    %v62 = vsel %vm57, %v50, 0
    %64 = vmatprep.subr.mxu0 0.0
    %65 = vmatpush1.msra.mxu0 %v51
    %66 = vmatprep.subr.mxu0 0.0
    %67 = vmatpush1.msra.mxu0 %v52
    %68 = vmatprep.subr.mxu0 0.0
    %69 = vmatpush1.msra.mxu0 %v53
    %70 = vmatprep.subr.mxu0 0.0
    %71 = vmatpush1.msra.mxu0 %v54
    %72 = vmatprep.subr.mxu0 0.0
    %73 = vmatpush1.msra.mxu0 0.0
    %74 = vmatprep.subr.mxu0 0.0
    %75 = vmatpush1.msra.mxu0 0.0
    %76 = vmatprep.subr.mxu0 0.0
    %77 = vmatpush1.msra.mxu0 0.0
    %78 = vmatprep.subr.mxu0 0.0
    %79 = vmatpush1.msra.mxu0 0.0
    %80 = vmatprep.subr.mxu0 0.0
    %81 = vmatpush1.msra.mxu0 0.0
    %82 = vmatprep.subr.mxu0 0.0
    %83 = vmatpush1.msra.mxu0 0.0
    %84 = vmatprep.subr.mxu0 0.0
    %85 = vmatpush1.msra.mxu0 0.0
    %86 = vmatprep.subr.mxu0 0.0
    %87 = vmatpush1.msra.mxu0 0.0
    %88 = vmatprep.subr.mxu0 0.0
    %89 = vmatpush1.msra.mxu0 0.0
    %90 = vmatprep.subr.mxu0 0.0
    %91 = vmatpush1.msra.mxu0 0.0
    %92 = vmatprep.subr.mxu0 0.0
    %93 = vmatpush1.msra.mxu0 0.0
    %94 = vmatprep.subr.mxu0 0.0
    %95 = vmatpush1.msra.mxu0 0.0
    %96 = vmatprep.subr.mxu0 0.0
    %97 = vmatpush1.msra.mxu0 0.0
    %98 = vmatprep.subr.mxu0 0.0
    %99 = vmatpush1.msra.mxu0 0.0
    %100 = vmatprep.subr.mxu0 0.0
    %101 = vmatpush1.msra.mxu0 0.0
    %102 = vmatprep.subr.mxu0 0.0
    %103 = vmatpush1.msra.mxu0 0.0
    %104 = vmatprep.subr.mxu0 0.0
    %105 = vmatpush1.msra.mxu0 0.0
    %106 = vmatprep.subr.mxu0 0.0
    %107 = vmatpush1.msra.mxu0 0.0
    %108 = vmatprep.subr.mxu0 0.0
    %109 = vmatpush1.msra.mxu0 0.0
    %110 = vmatprep.subr.mxu0 0.0
    %111 = vmatpush1.msra.mxu0 0.0
    %112 = vmatprep.subr.mxu0 0.0
    %113 = vmatpush1.msra.mxu0 0.0
    %114 = vmatprep.subr.mxu0 0.0
    %115 = vmatpush1.msra.mxu0 0.0
    %116 = vmatprep.subr.mxu0 0.0
    %117 = vmatpush1.msra.mxu0 0.0
    %118 = vmatprep.subr.mxu0 0.0
    %119 = vmatpush1.msra.mxu0 0.0
    %120 = vmatprep.subr.mxu0 0.0
    %121 = vmatpush1.msra.mxu0 0.0
    %122 = vmatprep.subr.mxu0 0.0
    %123 = vmatpush1.msra.mxu0 0.0
    %124 = vmatprep.subr.mxu0 0.0
    %125 = vmatpush1.msra.mxu0 0.0
    %126 = vmatprep.subr.mxu0 0.0
    %127 = vmatpush1.msra.mxu0 0.0
    %128 = vmatprep.mubr.f32.mxu0 0.0
    %129 = vmatmul.mubr.f32.gmra.mrb[0].mxu0 %v59
    %v130 = vpop.f32.mrb[0].mxu0
    %v131 = vadd.f32 0.0, %v130
    %v132 = vpop.f32.mrb[0].mxu0
    %133 = vmatprep.mubr.f32.mxu0 0.0
    %134 = vmatmul.mubr.f32.gmra.mrb[0].mxu0 %v62
    %v135 = vpop.f32.mrb[0].mxu0
    %v136 = vadd.f32 0.0, %v135
    %v137 = vpop.f32.mrb[0].mxu0
    %138 = vdwg.mxu0
    %v139 = vadd.f32 %v55, %v131
    %v140 = vadd.f32 %v56, %v136
    %141 = vst [vmem:[#allocation2] sm:$0xff] %v139
    %142 = vst [vmem:[#allocation2 + $0x8] sm:$0xff] %v140
    // Predicated region
    $region26: #{tpu_custom_call.1} parent=1 // pred_check
      %p143 = pneg %p43
    $region27: #{tpu_custom_call.1} parent=1 // pred_check_branch
      %145 = sbr.rel (%p143) target = $region29
    $region28: #{tpu_custom_call.1} parent=1 // pred_region
      %v146 = vld [vmem:[#allocation2] sm:$0xff]
      %v147 = vld [vmem:[#allocation2 + $0x8] sm:$0xff]
      %v148 = vld [vmem:[%s2] sm:$0x1]
      %v150 = vlaneseq
      %v151 = vshrl.u32 %v150, 7
      %v152 = vsub.s32 0, %v151
      %v153 = vrot.slane %v148, %v152
      %v155 = vadd.f32 %v146, %v153
      %v156 = vadd.f32 %v147, %v153
      %v157 = vmul.f32 %v155, 0.5
      %v158 = vmul.f32 %v156, 0.5
      %v159 = vmul.f32 %v155, 0.70710677
      %v160 = vmul.f32 %v156, 0.70710677
      %v161 = verf.f32.pop %v159
      %v162 = verf.f32.pop %v160
      %v163 = vadd.f32 %v161, 1.0
      %v164 = vadd.f32 %v162, 1.0
      %v165 = vmul.f32 %v157, %v163
      %v166 = vmul.f32 %v158, %v164
      %167 = vst [vmem:[#allocation8] sm:$0xff] %v165
      %168 = vst [vmem:[#allocation8 + $0x8] sm:$0xff] %v166
    $region29: #{tpu_custom_call.1} parent=1 // pred_fallthru
      _
    // Predicated region
    $region30: #{tpu_custom_call.1} parent=1 // pred_check
      _
    $region31: #{tpu_custom_call.1} parent=1 // pred_check_branch
      %170 = sbr.rel (0) target = $region33
    $region32: #{tpu_custom_call.1} parent=1 // pred_region
      %s172 = ssub.s32 256, 256
      %173 = vsyncadd [#allocation5], %s172
      %s174 = sshll.u32 [#allocation8], 4
      %s175 = int_to_ptr.vmem [resolvable:$true] %s174
      %180 = dma.vmem_to_hbm [thread:$0]  %s175, 256, %s3, [#allocation5], 128, 128, 8
    $region33: #{tpu_custom_call.1} parent=1 // pred_fallthru
      _
    // Predicated region
    $region34: #{tpu_custom_call.1} parent=1 // pred_check
      _
    $region35: #{tpu_custom_call.1} parent=1 // pred_check_branch
      %182 = sbr.rel (0) target = $region37
    $region36: #{tpu_custom_call.1} parent=1 // pred_region
      %183 = dma.done [#allocation5], 256
    $region37: #{tpu_custom_call.1} parent=1 // pred_fallthru
      _
    %184 = vsyncpa [#allocation4], 1
    %185 = vsyncpa [#allocation7], 1
    %186 = vsyncpa [#allocation5], 1

</llo_original>
